<compile_context>
chip_gen: v5e
topology: v5e:2x2
jax: 0.10.0
libtpu: 0.0.40
codegen_flags: <defaults>
</compile_context>

<pallas_src>
import functools

import jax
import jax.numpy as jnp
from jax.experimental import pallas as pl
from jax.experimental.pallas import tpu as pltpu


# ---------------------------------------------------------------------------
# Shared in-kernel helper: fc branch + channel softmax.
# ---------------------------------------------------------------------------
def _fc_channel_softmax(w_col, w1t, w2, b2_col):
    """w_col: (C,1) pooled weights -> (C,1) channel-softmax scale."""
    w1t = w1t.astype(jnp.float32)          # (C, C//2)  == w1.T
    w2 = w2.astype(jnp.float32)            # (C, C//2)
    b2_col = b2_col.astype(jnp.float32)    # (C, 1)

    # layer 1 (1x1 conv, no bias) + ReLU:  h[o] = relu(sum_c w1[o,c] * w[c])
    # VPU broadcast-multiply + sublane reduce -> lane-dense (1, C//2) row.
    h = jnp.maximum(jnp.sum(w1t * w_col, axis=0, keepdims=True), 0.0)

    # layer 2 (1x1 conv + bias):  z[c] = sum_o w2[c,o] * h[o] + b2[c]
    # VPU broadcast-multiply + lane reduce -> (C, 1) column.
    z = jnp.sum(w2 * h, axis=-1, keepdims=True) + b2_col

    # channel softmax (torch dim=1) over the sublane axis.
    zm = jnp.max(z, axis=0, keepdims=True)
    ze = jnp.exp(z - zm)
    return ze / jnp.sum(ze, axis=0, keepdims=True)      # (C, 1)


# ---------------------------------------------------------------------------
# Path A: monolithic kernel (full (C, HW) slab per batch element).
# ---------------------------------------------------------------------------
def _monolithic_kernel(x_ref, w1t_ref, w2_ref, b2_ref, o_ref):
    x = x_ref[0].astype(jnp.float32)                     # (C, N)
    n = x.shape[-1]

    # spatial softmax stats -- softmax itself is never materialized.
    m = jnp.max(x, axis=-1, keepdims=True)               # (C, 1)
    e = jnp.exp(x - m)                                   # (C, N)
    s = jnp.sum(e, axis=-1, keepdims=True)               # (C, 1)
    xe = jnp.sum(x * e, axis=-1, keepdims=True)          # (C, 1)
    # mean(x * softmax(x)) == sum(x*e) / (sum(e) * N); exact divide on C
    # elements only (approx=True reciprocal would drift vs the 1e-5 tolerance).
    w_col = xe / (s * n)

    scale = _fc_channel_softmax(w_col, w1t_ref[...], w2_ref[...], b2_ref[...])
    o_ref[0] = (x * scale).astype(o_ref.dtype)


def _wca_monolithic(xr, w1t, w2, b2c):
    b, c, n = xr.shape
    # ~2 in bufs + 2 out bufs + f32 temps of the block, plus headroom;
    # clamped to stay inside the v7x scoped-VMEM comfort zone.
    vmem_limit = int(min(56 << 20, max(16 << 20, 8 * c * n * 4 + (2 << 20))))
    return pl.pallas_call(
        _monolithic_kernel,
        out_shape=jax.ShapeDtypeStruct((b, c, n), xr.dtype),
        grid_spec=pltpu.PrefetchScalarGridSpec(
            num_scalar_prefetch=0,
            grid=(b,),
            in_specs=[
                pl.BlockSpec((1, c, n), lambda i: (i, 0, 0)),
                pl.BlockSpec((c, c // 2), lambda i: (0, 0)),
                pl.BlockSpec((c, c // 2), lambda i: (0, 0)),
                pl.BlockSpec((c, 1), lambda i: (0, 0)),
            ],
            out_specs=pl.BlockSpec((1, c, n), lambda i: (i, 0, 0)),
        ),
        compiler_params=pltpu.CompilerParams(
            dimension_semantics=("parallel",),
            vmem_limit_bytes=vmem_limit,
        ),
    )(xr, w1t, w2, b2c)


# ---------------------------------------------------------------------------
# Path B: two-phase streaming (online softmax stats -> apply scale).
# ---------------------------------------------------------------------------
def _make_stats_kernel(n_total):
    def kernel(x_ref, w1t_ref, w2_ref, b2_ref, scale_ref, m_sc, s_sc, t_sc):
        ti = pl.program_id(1)

        @pl.when(ti == 0)
        def _():
            m_sc[...] = jnp.full_like(m_sc, -jnp.inf)
            s_sc[...] = jnp.zeros_like(s_sc)
            t_sc[...] = jnp.zeros_like(t_sc)

        x = x_ref[0].astype(jnp.float32)                 # (C, T)
        m_prev = m_sc[...]
        m_new = jnp.maximum(m_prev, jnp.max(x, axis=-1, keepdims=True))
        alpha = jnp.exp(m_prev - m_new)                  # 0.0 on the first tile
        e = jnp.exp(x - m_new)
        s_sc[...] = alpha * s_sc[...] + jnp.sum(e, axis=-1, keepdims=True)
        t_sc[...] = alpha * t_sc[...] + jnp.sum(x * e, axis=-1, keepdims=True)
        m_sc[...] = m_new

        @pl.when(ti == pl.num_programs(1) - 1)
        def _():
            w_col = t_sc[...] / (s_sc[...] * n_total)
            scale_ref[0] = _fc_channel_softmax(
                w_col, w1t_ref[...], w2_ref[...], b2_ref[...])

    return kernel


def _wca_stats(xr, w1t, w2, b2c, tile, n_total):
    b, c, _ = xr.shape
    num_t = n_total // tile
    vmem_limit = int(min(56 << 20, max(8 << 20, 8 * c * tile * 4 + (2 << 20))))
    return pl.pallas_call(
        _make_stats_kernel(n_total),
        out_shape=jax.ShapeDtypeStruct((b, c, 1), jnp.float32),
        grid_spec=pltpu.PrefetchScalarGridSpec(
            num_scalar_prefetch=0,
            grid=(b, num_t),
            in_specs=[
                pl.BlockSpec((1, c, tile), lambda i, j: (i, 0, j)),
                pl.BlockSpec((c, c // 2), lambda i, j: (0, 0)),
                pl.BlockSpec((c, c // 2), lambda i, j: (0, 0)),
                pl.BlockSpec((c, 1), lambda i, j: (0, 0)),
            ],
            out_specs=pl.BlockSpec((1, c, 1), lambda i, j: (i, 0, 0)),
            scratch_shapes=[pltpu.VMEM((c, 1), jnp.float32)] * 3,
        ),
        compiler_params=pltpu.CompilerParams(
            dimension_semantics=("parallel", "arbitrary"),
            vmem_limit_bytes=vmem_limit,
        ),
    )(xr, w1t, w2, b2c)


def _apply_kernel(x_ref, scale_ref, o_ref):
    x = x_ref[0].astype(jnp.float32)                     # (C, T)
    o_ref[0] = (x * scale_ref[0]).astype(o_ref.dtype)


def _wca_apply(xr, scale, tile):
    b, c, n = xr.shape
    num_t = n // tile
    vmem_limit = int(min(56 << 20, max(8 << 20, 6 * c * tile * 4 + (2 << 20))))
    return pl.pallas_call(
        _apply_kernel,
        out_shape=jax.ShapeDtypeStruct((b, c, n), xr.dtype),
        grid_spec=pltpu.PrefetchScalarGridSpec(
            num_scalar_prefetch=0,
            grid=(b, num_t),
            in_specs=[
                pl.BlockSpec((1, c, tile), lambda i, j: (i, 0, j)),
                pl.BlockSpec((1, c, 1), lambda i, j: (i, 0, 0)),
            ],
            out_specs=pl.BlockSpec((1, c, tile), lambda i, j: (i, 0, j)),
        ),
        compiler_params=pltpu.CompilerParams(
            # both axes independent once the scale exists -> feeds both v7x TCs
            dimension_semantics=("parallel", "parallel"),
            vmem_limit_bytes=vmem_limit,
        ),
    )(xr, scale)


# ---------------------------------------------------------------------------
# Wrapper.
# ---------------------------------------------------------------------------
def _pick_spatial_tile(c, n, itemsize=4, target_bytes=1 << 20):
    """Largest T dividing n that is a multiple of 128 and keeps c*T small."""
    if n % 128 != 0:
        return None
    max_t = max(128, (target_bytes // (c * itemsize)) // 128 * 128)
    t = min(n, max_t)
    while t >= 128:
        if n % t == 0:
            return t
        t -= 128
    return None


def wca_forward(x, w1, w2, b2, *, force_two_phase=False, spatial_tile=None):
    """x: (B, C, H, W); w1: (C//2, C); w2: (C, C//2); b2: (C,)."""
    b, c, hgt, wid = x.shape
    assert c % 2 == 0, "WCA requires an even channel count"
    n = hgt * wid
    xr = x.reshape(b, c, n)

    # Weight layout for the VPU fc path: layer-1 weight pre-transposed in the
    # wrapper (channel-major), layer-2 weight in its natural (C, C//2) shape,
    # bias as a (C,1) column (tiny; matches the column orientation of z).
    w1t = jnp.asarray(w1).T                              # (C, C//2)
    w2a = jnp.asarray(w2)                                # (C, C//2)
    b2c = jnp.asarray(b2).reshape(c, 1)

    mono_bytes = 8 * c * n * 4
    use_mono = (not force_two_phase) and spatial_tile is None \
        and mono_bytes <= (48 << 20)       # stays v7x-safe (64 MiB physical)

    if use_mono:
        out = _wca_monolithic(xr, w1t, w2a, b2c)
    else:
        tile = spatial_tile if spatial_tile is not None else _pick_spatial_tile(c, n)
        if tile is None or n % tile != 0 or (tile != n and tile % 128 != 0):
            # TODO(synk): pad the spatial dim to a 128 multiple in the wrapper
            # for lane-dense tiling; fall back to the monolithic path for now.
            out = _wca_monolithic(xr, w1t, w2a, b2c)
        else:
            scale = _wca_stats(xr, w1t, w2a, b2c, tile, n)
            out = _wca_apply(xr, scale, tile)
    return out.reshape(b, c, hgt, wid)


# ---------------------------------------------------------------------------
# Pure-JAX reference.
# ---------------------------------------------------------------------------
def wca_reference(x, w1, w2, b2):
    b, c, hgt, wid = x.shape
    xr = x.reshape(b, c, -1)
    sm = jax.nn.softmax(xr, axis=-1)
    w = jnp.mean(xr * sm, axis=-1)                       # (B, C)
    h = jnp.maximum(jnp.einsum("oc,bc->bo", w1, w), 0.0)
    z = jnp.einsum("co,bo->bc", w2, h) + b2[None, :]
    scale = jax.nn.softmax(z, axis=1)                    # (B, C)
    return x * scale[:, :, None, None]


if __name__ == "__main__":
    key = jax.random.PRNGKey(0)
    k_x, k_w1, k_w2, k_b2 = jax.random.split(key, 4)

    B, C, H, W = 2, 4, 16, 16
    x = jax.random.normal(k_x, (B, C, H, W), dtype=jnp.float32)

    # Deterministic parameter init (BasicConv2d conv: normal std=0.01, no bias;
    # second conv: small normal weights + bias).
    w1 = 0.01 * jax.random.normal(k_w1, (C // 2, C), dtype=jnp.float32)
    w2 = 0.1 * jax.random.normal(k_w2, (C, C // 2), dtype=jnp.float32)
    b2 = 0.1 * jax.random.normal(k_b2, (C,), dtype=jnp.float32)

    y_ref = wca_reference(x, w1, w2, b2)

    # Path A: monolithic single-pass kernel (block fits VMEM comfortably).
    y = jax.block_until_ready(wca_forward(x, w1, w2, b2))
    assert y.shape == (B, C, H, W)
    assert jnp.allclose(y, y_ref, atol=1e-5, rtol=1e-5), "monolithic mismatch"

    # Path B: two-phase streaming kernels (online-softmax stats + apply),
    # forced here so the v7x-friendly tiled path is exercised too.
    y2 = jax.block_until_ready(
        wca_forward(x, w1, w2, b2, force_two_phase=True, spatial_tile=128))
    assert jnp.allclose(y2, y_ref, atol=1e-5, rtol=1e-5), "two-phase mismatch"

    # bf16 I/O (halves HBM traffic; in-kernel compute stays f32).
    xb = x.astype(jnp.bfloat16)
    yb = jax.block_until_ready(wca_forward(xb, w1, w2, b2))
    yb_ref = wca_reference(xb.astype(jnp.float32), w1, w2, b2)
    assert yb.dtype == jnp.bfloat16
    assert jnp.allclose(yb.astype(jnp.float32), yb_ref, atol=2e-2, rtol=2e-2), \
        "bf16 I/O mismatch"

    print("KERNEL_OK")
</pallas_src>

<mosaic_0001>
module attributes {stable_mosaic.version = 11 : i64} {
  func.func @_monolithic_kernel(%arg0: i32, %arg1: memref<1x4x256xf32, #tpu.memory_space<vmem>>, %arg2: memref<4x2xf32, #tpu.memory_space<vmem>>, %arg3: memref<4x2xf32, #tpu.memory_space<vmem>>, %arg4: memref<4x1xf32, #tpu.memory_space<vmem>>, %arg5: memref<1x4x256xf32, #tpu.memory_space<vmem>>) attributes {dimension_semantics = [#tpu.dimension_semantics<parallel>], iteration_bounds = array<i64: 2>, scalar_prefetch = 0 : i64, scratch_operands = 0 : i64, tpu.core_type = #tpu.core_type<tc>, window_params = [{transform_indices = @transform_0, window_bounds = array<i64: 1, 4, 256>}, {pipeline_mode = #tpu.pipeline_mode<synchronous>, transform_indices = @transform_1, window_bounds = array<i64: 4, 2>}, {pipeline_mode = #tpu.pipeline_mode<synchronous>, transform_indices = @transform_2, window_bounds = array<i64: 4, 2>}, {pipeline_mode = #tpu.pipeline_mode<synchronous>, transform_indices = @transform_3, window_bounds = array<i64: 4, 1>}, {transform_indices = @transform_4, window_bounds = array<i64: 1, 4, 256>}]} {
    %c0 = arith.constant 0 : index
    %c0_0 = arith.constant 0 : index
    %c0_1 = arith.constant 0 : index
    %0 = vector.load %arg1[%c0, %c0_0, %c0_1] : memref<1x4x256xf32, #tpu.memory_space<vmem>>, vector<1x4x256xf32>
    %1 = vector.shape_cast %0 : vector<1x4x256xf32> to vector<4x256xf32>
    %cst = arith.constant dense<0xFF800000> : vector<4xf32>
    %2 = vector.multi_reduction <maximumf>, %1, %cst [1] : vector<4x256xf32> to vector<4xf32>
    %3 = vector.shape_cast %2 : vector<4xf32> to vector<4x1xf32>
    %4 = vector.broadcast %3 : vector<4x1xf32> to vector<4x256xf32>
    %5 = arith.subf %1, %4 : vector<4x256xf32>
    %6 = math.exp %5 : vector<4x256xf32>
    %cst_2 = arith.constant dense<0.000000e+00> : vector<4xf32>
    %7 = vector.multi_reduction <add>, %6, %cst_2 [1] : vector<4x256xf32> to vector<4xf32>
    %8 = vector.shape_cast %7 : vector<4xf32> to vector<4x1xf32>
    %9 = arith.mulf %1, %6 : vector<4x256xf32>
    %cst_3 = arith.constant dense<0.000000e+00> : vector<4xf32>
    %10 = vector.multi_reduction <add>, %9, %cst_3 [1] : vector<4x256xf32> to vector<4xf32>
    %11 = vector.shape_cast %10 : vector<4xf32> to vector<4x1xf32>
    %cst_4 = arith.constant 2.560000e+02 : f32
    %12 = vector.broadcast %cst_4 : f32 to vector<4x1xf32>
    %13 = arith.mulf %8, %12 : vector<4x1xf32>
    %14 = arith.divf %11, %13 : vector<4x1xf32>
    %c0_5 = arith.constant 0 : index
    %c0_6 = arith.constant 0 : index
    %15 = vector.load %arg2[%c0_5, %c0_6] : memref<4x2xf32, #tpu.memory_space<vmem>>, vector<4x2xf32>
    %c0_7 = arith.constant 0 : index
    %c0_8 = arith.constant 0 : index
    %16 = vector.load %arg3[%c0_7, %c0_8] : memref<4x2xf32, #tpu.memory_space<vmem>>, vector<4x2xf32>
    %c0_9 = arith.constant 0 : index
    %c0_10 = arith.constant 0 : index
    %17 = vector.load %arg4[%c0_9, %c0_10] : memref<4x1xf32, #tpu.memory_space<vmem>>, vector<4x1xf32>
    %18 = vector.broadcast %14 : vector<4x1xf32> to vector<4x2xf32>
    %19 = arith.mulf %15, %18 : vector<4x2xf32>
    %cst_11 = arith.constant dense<0.000000e+00> : vector<2xf32>
    %20 = vector.multi_reduction <add>, %19, %cst_11 [0] : vector<4x2xf32> to vector<2xf32>
    %21 = vector.shape_cast %20 : vector<2xf32> to vector<1x2xf32>
    %cst_12 = arith.constant 0.000000e+00 : f32
    %22 = vector.broadcast %cst_12 : f32 to vector<1x2xf32>
    %23 = arith.maximumf %21, %22 : vector<1x2xf32>
    %24 = vector.broadcast %23 : vector<1x2xf32> to vector<4x2xf32>
    %25 = arith.mulf %16, %24 : vector<4x2xf32>
    %cst_13 = arith.constant dense<0.000000e+00> : vector<4xf32>
    %26 = vector.multi_reduction <add>, %25, %cst_13 [1] : vector<4x2xf32> to vector<4xf32>
    %27 = vector.shape_cast %26 : vector<4xf32> to vector<4x1xf32>
    %28 = arith.addf %27, %17 : vector<4x1xf32>
    %cst_14 = arith.constant dense<0xFF800000> : vector<1xf32>
    %29 = vector.multi_reduction <maximumf>, %28, %cst_14 [0] : vector<4x1xf32> to vector<1xf32>
    %30 = vector.shape_cast %29 : vector<1xf32> to vector<1x1xf32>
    %31 = vector.broadcast %30 : vector<1x1xf32> to vector<4x1xf32>
    %32 = arith.subf %28, %31 : vector<4x1xf32>
    %33 = math.exp %32 : vector<4x1xf32>
    %cst_15 = arith.constant dense<0.000000e+00> : vector<1xf32>
    %34 = vector.multi_reduction <add>, %33, %cst_15 [0] : vector<4x1xf32> to vector<1xf32>
    %35 = vector.shape_cast %34 : vector<1xf32> to vector<1x1xf32>
    %36 = vector.broadcast %35 : vector<1x1xf32> to vector<4x1xf32>
    %37 = arith.divf %33, %36 : vector<4x1xf32>
    %38 = vector.broadcast %37 : vector<4x1xf32> to vector<4x256xf32>
    %39 = arith.mulf %1, %38 : vector<4x256xf32>
    %c0_16 = arith.constant 0 : index
    %c0_17 = arith.constant 0 : index
    %c0_18 = arith.constant 0 : index
    %40 = vector.load %arg5[%c0_16, %c0_17, %c0_18] : memref<1x4x256xf32, #tpu.memory_space<vmem>>, vector<1x4x256xf32>
    %41 = vector.shape_cast %40 : vector<1x4x256xf32> to vector<4x256xf32>
    %42 = vector.shape_cast %39 : vector<4x256xf32> to vector<1x4x256xf32>
    tpu.vector_store %arg5[%c0_16, %c0_17, %c0_18], %42 {strides = array<i32>} : memref<1x4x256xf32, #tpu.memory_space<vmem>>, vector<1x4x256xf32>,
    return
  }
  func.func @transform_0(%arg0: i32) -> (i32, i32, i32) {
    %c0_i32 = arith.constant 0 : i32
    %c0_i32_0 = arith.constant 0 : i32
    %c0_i32_1 = arith.constant 0 : i32
    return %arg0, %c0_i32, %c0_i32_0 : i32, i32, i32
  }
  func.func @transform_1(%arg0: i32) -> (i32, i32) {
    %c0_i32 = arith.constant 0 : i32
    %c0_i32_0 = arith.constant 0 : i32
    %c0_i32_1 = arith.constant 0 : i32
    return %c0_i32, %c0_i32_0 : i32, i32
  }
  func.func @transform_2(%arg0: i32) -> (i32, i32) {
    %c0_i32 = arith.constant 0 : i32
    %c0_i32_0 = arith.constant 0 : i32
    %c0_i32_1 = arith.constant 0 : i32
    return %c0_i32, %c0_i32_0 : i32, i32
  }
  func.func @transform_3(%arg0: i32) -> (i32, i32) {
    %c0_i32 = arith.constant 0 : i32
    %c0_i32_0 = arith.constant 0 : i32
    %c0_i32_1 = arith.constant 0 : i32
    return %c0_i32, %c0_i32_0 : i32, i32
  }
  func.func @transform_4(%arg0: i32) -> (i32, i32, i32) {
    %c0_i32 = arith.constant 0 : i32
    %c0_i32_0 = arith.constant 0 : i32
    %c0_i32_1 = arith.constant 0 : i32
    return %arg0, %c0_i32, %c0_i32_0 : i32, i32, i32
  }
}

</mosaic_0001>

<llo_original>
// kernel: tpu_custom_call.1
$region0: #{tpu_custom_call.1}
  #allocation0 [shape = 'u32[]', space=smem, size = 0x4, offset = 0x4, fixed_abs, tag = 'smem constant byte address 0x4 - core index']
  #allocation1 [shape = 'u32[72,128]{1,0:T(1,128)}', space=vmem, size = 0x9000, scoped, tag = 'internal scratch']
  %s0 = inlined_call_operand.hbm [shape: f32[2,4,256], index: 0, kind: input, shape index: {}]
  %s1 = inlined_call_operand.vmem [shape: f32[4,2], index: 1, kind: input, shape index: {}]
  %s2 = inlined_call_operand.vmem [shape: f32[4,2], index: 2, kind: input, shape index: {}]
  %s3 = inlined_call_operand.vmem [shape: f32[4,1], index: 3, kind: input, shape index: {}]
  %s4 = inlined_call_operand.hbm [shape: f32[2,4,256], index: 4, kind: output, shape index: {}]
  %s5 = sld [smem:[#allocation0]]
  $region53: #{tpu_custom_call.1} parent=0
    _
  %s7 = ssub.s32 1, %s5
  %s8 = scalar_select 0, %s7, %s5
  $region1: #{tpu_custom_call.1} parent=0
    #allocation2 [shape = 'u8[8192]{0}', space=vmem, size = 0x2000, scoped, tag = 'input window, operand 0']
    #allocation3 [shape = 's32[2]{0}', space=sflag, size = 0x8, scoped, tag = 'scoped memory for tpu_custom_call.1']
    #allocation4 [shape = 's32[2]{0}', space=sflag, size = 0x8, scoped, tag = 'scoped memory for tpu_custom_call.1']
    #allocation5 [shape = 'u8[8192]{0}', space=vmem, size = 0x2000, scoped, tag = 'output window, operand 0']
    %9 = vsyncpa [#allocation3], 0
    %s10 = scalar_lea.sflag [#allocation3], 1
    %11 = vsyncpa %s10, 0
    %12 = vsyncpa [#allocation4], 0
    %s13 = scalar_lea.sflag [#allocation4], 1
    %14 = vsyncpa %s13, 0
    loop: start=0, step=1, limit=4
    $region2: #{tpu_custom_call.1} parent=1 // loop_pre_header
      _
    $region3: #{tpu_custom_call.1} parent=1 // loop_header
      %s16 = sphi 0, %s20
      %p17 = scmp.ge.s32.totalorder %s16, 4
      %s26 = sphi 0, %s28
      %s29 = sphi 0, %s26
      %s30 = sphi 0, %s29
      %s46 = sphi 0, %s30
      %s50 = sphi 0, %s50
      %s52 = sphi 0, %s50
      %s53 = sphi 0, %s52
      %s67 = sphi 0, %s53
      %s71 = sphi 0, %s71
      %s73 = sphi 0, %s71
      %s74 = sphi 0, %s73
      %s88 = sphi 0, %s74
      %s92 = sphi 0, %s92
      %s94 = sphi 0, %s92
      %s95 = sphi 0, %s94
      %s109 = sphi 0, %s95
      %s115 = sphi 0, %s117
      %s118 = sphi 0, %s115
      %s119 = sphi 0, %s118
      %s135 = sphi 0, %s119
    $region4: #{tpu_custom_call.1} parent=1 // loop_header_branch
      %19 = sbr.rel (%p17) target = $region8
    $region5: #{tpu_custom_call.1} parent=1 // loop_body
      %s21 = ssub.s32 %s16, 1
      %s22 = ssub.s32 %s16, 2
      %s23 = sadd.s32 %s16, 1
      %s24 = ssub.s32 %s16, %s23
      %p25 = scmp.eq.s32.totalorder %s24, 0
      %s27 = sadd.s32 %s26, 1
      %s28 = scalar_select %p25, %s26, %s27
      %p31 = pneg %p25
      %p32 = scmp.eq.s32.totalorder %s16, 1
      %p33 = por %p31, %p32
      %p34 = scmp.ne.s32.totalorder %s26, %s29
      %p35 = scmp.eq.s32.totalorder %s16, 0
      %p36 = por %p34, %p35
      %p37 = scmp.ne.s32.totalorder %s26, %s29
      %p38 = scmp.eq.s32.totalorder %s21, 1
      %p39 = por %p37, %p38
      %p40 = scmp.ne.s32.totalorder %s29, %s30
      %p41 = scmp.eq.s32.totalorder %s21, 0
      %p42 = por %p40, %p41
      %p43 = scmp.ne.s32.totalorder %s29, %s30
      %p44 = scmp.eq.s32.totalorder %s22, 1
      %p45 = por %p43, %p44
      %p47 = scmp.ne.s32.totalorder %s30, %s46
      %p48 = scmp.eq.s32.totalorder %s22, 0
      %p49 = por %p47, %p48
      %s51 = sadd.s32 %s50, 1
      %p54 = scmp.eq.s32.totalorder %s16, 1
      %p55 = scmp.ne.s32.totalorder %s50, %s52
      %p56 = scmp.eq.s32.totalorder %s16, 0
      %p57 = por %p55, %p56
      %p58 = scmp.ne.s32.totalorder %s50, %s52
      %p59 = scmp.eq.s32.totalorder %s21, 1
      %p60 = por %p58, %p59
      %p61 = scmp.ne.s32.totalorder %s52, %s53
      %p62 = scmp.eq.s32.totalorder %s21, 0
      %p63 = por %p61, %p62
      %p64 = scmp.ne.s32.totalorder %s52, %s53
      %p65 = scmp.eq.s32.totalorder %s22, 1
      %p66 = por %p64, %p65
      %p68 = scmp.ne.s32.totalorder %s53, %s67
      %p69 = scmp.eq.s32.totalorder %s22, 0
      %p70 = por %p68, %p69
      %s72 = sadd.s32 %s71, 1
      %p75 = scmp.eq.s32.totalorder %s16, 1
      %p76 = scmp.ne.s32.totalorder %s71, %s73
      %p77 = scmp.eq.s32.totalorder %s16, 0
      %p78 = por %p76, %p77
      %p79 = scmp.ne.s32.totalorder %s71, %s73
      %p80 = scmp.eq.s32.totalorder %s21, 1
      %p81 = por %p79, %p80
      %p82 = scmp.ne.s32.totalorder %s73, %s74
      %p83 = scmp.eq.s32.totalorder %s21, 0
      %p84 = por %p82, %p83
      %p85 = scmp.ne.s32.totalorder %s73, %s74
      %p86 = scmp.eq.s32.totalorder %s22, 1
      %p87 = por %p85, %p86
      %p89 = scmp.ne.s32.totalorder %s74, %s88
      %p90 = scmp.eq.s32.totalorder %s22, 0
      %p91 = por %p89, %p90
      %s93 = sadd.s32 %s92, 1
      %p96 = scmp.eq.s32.totalorder %s16, 1
      %p97 = scmp.ne.s32.totalorder %s92, %s94
      %p98 = scmp.eq.s32.totalorder %s16, 0
      %p99 = por %p97, %p98
      %p100 = scmp.ne.s32.totalorder %s92, %s94
      %p101 = scmp.eq.s32.totalorder %s21, 1
      %p102 = por %p100, %p101
      %p103 = scmp.ne.s32.totalorder %s94, %s95
      %p104 = scmp.eq.s32.totalorder %s21, 0
      %p105 = por %p103, %p104
      %p106 = scmp.ne.s32.totalorder %s94, %s95
      %p107 = scmp.eq.s32.totalorder %s22, 1
      %p108 = por %p106, %p107
      %p110 = scmp.ne.s32.totalorder %s95, %s109
      %p111 = scmp.eq.s32.totalorder %s22, 0
      %p112 = por %p110, %p111
      %s113 = ssub.s32 %s16, %s23
      %p114 = scmp.eq.s32.totalorder %s113, 0
      %s116 = sadd.s32 %s115, 1
      %s117 = scalar_select %p114, %s115, %s116
      %p120 = pneg %p114
      %p121 = scmp.eq.s32.totalorder %s16, 1
      %p122 = por %p120, %p121
      %p123 = scmp.ne.s32.totalorder %s115, %s118
      %p124 = scmp.eq.s32.totalorder %s16, 0
      %p125 = por %p123, %p124
      %p126 = scmp.ne.s32.totalorder %s115, %s118
      %p127 = scmp.eq.s32.totalorder %s21, 1
      %p128 = por %p126, %p127
      %p129 = scmp.ne.s32.totalorder %s118, %s119
      %p130 = scmp.eq.s32.totalorder %s21, 0
      %p131 = por %p129, %p130
      %p132 = scmp.ne.s32.totalorder %s118, %s119
      %p133 = scmp.eq.s32.totalorder %s22, 1
      %p134 = por %p132, %p133
      %p136 = scmp.ne.s32.totalorder %s119, %s135
      %p137 = scmp.eq.s32.totalorder %s22, 0
      %p138 = por %p136, %p137
      %p139 = scmp.le.s32.totalorder 1, %s16
      %p140 = scmp.lt.s32.totalorder %s16, 3
      %p141 = pnand %p139, %p140
      %p142 = pneg %p141
      // Predicated region
      $region9: #{tpu_custom_call.1} parent=5 // pred_check
        _
      $region10: #{tpu_custom_call.1} parent=5 // pred_check_branch
        %144 = sbr.rel (%p141) target = $region12
      $region11: #{tpu_custom_call.1} parent=5 // pred_region
        %s145 = ssub.s32 %s16, 1
        // Predicated region
        $region13: #{tpu_custom_call.1} parent=11 // pred_check
          %p146 = pneg %p63
        $region14: #{tpu_custom_call.1} parent=11 // pred_check_branch
          %148 = sbr.rel (%p146) target = $region16
        $region15: #{tpu_custom_call.1} parent=11 // pred_region
          _
        $region16: #{tpu_custom_call.1} parent=11 // pred_fallthru
          _
        // Predicated region
        $region17: #{tpu_custom_call.1} parent=11 // pred_check
          %p149 = pneg %p84
        $region18: #{tpu_custom_call.1} parent=11 // pred_check_branch
          %151 = sbr.rel (%p149) target = $region20
        $region19: #{tpu_custom_call.1} parent=11 // pred_region
          _
        $region20: #{tpu_custom_call.1} parent=11 // pred_fallthru
          _
        // Predicated region
        $region21: #{tpu_custom_call.1} parent=11 // pred_check
          %p152 = pneg %p105
        $region22: #{tpu_custom_call.1} parent=11 // pred_check_branch
          %154 = sbr.rel (%p152) target = $region24
        $region23: #{tpu_custom_call.1} parent=11 // pred_region
          _
        $region24: #{tpu_custom_call.1} parent=11 // pred_fallthru
          _
      $region12: #{tpu_custom_call.1} parent=5 // pred_fallthru
        _
      %p155 = scmp.lt.s32.totalorder %s16, 2
      // Predicated region
      $region25: #{tpu_custom_call.1} parent=5 // pred_check
        %p156 = pneg %p155
      $region26: #{tpu_custom_call.1} parent=5 // pred_check_branch
        %158 = sbr.rel (%p156) target = $region28
      $region27: #{tpu_custom_call.1} parent=5 // pred_region
        // Predicated region
        $region29: #{tpu_custom_call.1} parent=27 // pred_check
          %p159 = pneg %p36
        $region30: #{tpu_custom_call.1} parent=27 // pred_check_branch
          %161 = sbr.rel (%p159) target = $region32
        $region31: #{tpu_custom_call.1} parent=27 // pred_region
          %s162 = sand.u32 %s26, 1
          %s163 = scalar_lea.sflag [#allocation3], %s162
          %s164 = sand.u32 %s26, 1
          %s165 = smul.addr %s164, 8
          %s166 = scalar_lea.vmem [#allocation2], %s165
          %168 = vsyncadd %s163, 0
          %s169 = smul.addr %s16, 2
          %s170 = smul.addr %s169, 4
          %s171 = scalar_lea.hbm %s0, %s170
          %s173 = sshll.u32 %s171, 4
          %s174 = int_to_ptr.hbm [resolvable:$true] %s173
          %s175 = sshll.u32 %s166, 4
          %s176 = int_to_ptr.vmem [resolvable:$true] %s175
          %178 = dma.hbm_to_vmem [thread:$0]  %s174, 128, %s176, %s163
        $region32: #{tpu_custom_call.1} parent=27 // pred_fallthru
          _
      $region28: #{tpu_custom_call.1} parent=5 // pred_fallthru
        _
      %p179 = scmp.le.s32.totalorder 1, %s16
      %p180 = scmp.lt.s32.totalorder %s16, 3
      %p181 = pnand %p179, %p180
      %p182 = pneg %p181
      // Predicated region
      $region33: #{tpu_custom_call.1} parent=5 // pred_check
        _
      $region34: #{tpu_custom_call.1} parent=5 // pred_check_branch
        %184 = sbr.rel (%p181) target = $region36
      $region35: #{tpu_custom_call.1} parent=5 // pred_region
        %s185 = ssub.s32 %s16, 1
        %s186 = sand.u32 %s29, 1
        %s187 = scalar_lea.sflag [#allocation3], %s186
        %s188 = sand.u32 %s29, 1
        %s189 = smul.addr %s188, 8
        %s190 = scalar_lea.vmem [#allocation2], %s189
        // Predicated region
        $region37: #{tpu_custom_call.1} parent=35 // pred_check
          %p191 = pneg %p42
        $region38: #{tpu_custom_call.1} parent=35 // pred_check_branch
          %193 = sbr.rel (%p191) target = $region40
        $region39: #{tpu_custom_call.1} parent=35 // pred_region
          %195 = dma.done %s187, 128
        $region40: #{tpu_custom_call.1} parent=35 // pred_fallthru
          _
        %s196 = sand.u32 %s29, 1
        %s197 = scalar_lea.sflag [#allocation3], %s196
        %s198 = sand.u32 %s29, 1
        %s199 = smul.addr %s198, 8
        %s200 = scalar_lea.vmem [#allocation2], %s199
        %p201 = pneg %p42
        %p202 = pneg %p39
        %p203 = pneg %p63
        %p204 = pneg %p60
        %p205 = pneg %p84
        %p206 = pneg %p81
        %p207 = pneg %p105
        %p208 = pneg %p102
        %p209 = pneg %p131
        %p210 = pneg %p128
        %s211 = sand.u32 %s118, 1
        %s212 = scalar_lea.sflag [#allocation4], %s211
        %s213 = sand.u32 %s118, 1
        %s214 = smul.addr %s213, 8
        %s215 = scalar_lea.vmem [#allocation5], %s214
        %v216 = vld [vmem:[%s190] sm:$0xff]
        %218 = vst [vmem:[#allocation1] ss:$2 sm:$0xff] %v216
        %v219 = vld.sshfl [vmem:[#allocation1] sm:$0xff pattern:$0x75316420]
        %v220 = vld.sshfl [vmem:[#allocation1 + $0x8] sm:$0xff pattern:$0x75316420]
        %vm223 = vcmask 1043456
        %v224 = vsel %vm223, %v219, -inf
        %v225 = vsel %vm223, %v220, -inf
        %v226 = vmax.f32 %v224, %v225
        %227 = vmax.xlane.f32.xlu0 %v226
        %v228 = vpop.xlane.xlu0 %227
        %v231 = vunpack.c.l.s4 839922192
        %v232 = vunpack.c.0.s8 %v231
        %v233 = vperm.slane %v228, %v232
        %v235 = vsub.f32 %v216, %v233
        %v236 = vmul.f32 %v235, 1.442695
        %v237 = vpow.pop %v236
        %239 = vst [vmem:[#allocation1] ss:$2 sm:$0xff] %v237
        %v240 = vld.sshfl [vmem:[#allocation1] sm:$0xff pattern:$0x75316420]
        %v241 = vld.sshfl [vmem:[#allocation1 + $0x8] sm:$0xff pattern:$0x75316420]
        %v244 = vsel %vm223, %v240, 0.0
        %v245 = vsel %vm223, %v241, 0.0
        %v246 = vadd.f32 %v244, %v245
        %247 = vadd.xlane.f32.xlu0 %v246
        %v248 = vpop.xlane.xlu0 %247
        %v249 = vmul.f32 %v216, %v237
        %251 = vst [vmem:[#allocation1] ss:$2 sm:$0xff] %v249
        %v252 = vld.sshfl [vmem:[#allocation1] sm:$0xff pattern:$0x75316420]
        %v253 = vld.sshfl [vmem:[#allocation1 + $0x8] sm:$0xff pattern:$0x75316420]
        %v256 = vsel %vm223, %v252, 0.0
        %v257 = vsel %vm223, %v253, 0.0
        %v258 = vadd.f32 %v256, %v257
        %259 = vadd.xlane.f32.xlu0 %v258
        %v260 = vpop.xlane.xlu0 %259
        %v261 = vmul.f32 %v248, 256.0
        %v262 = vrcp.pop %v261
        %v263 = vmul.f32 %v261, %v262
        %v264 = vsub.f32 1.0, %v263
        %v265 = vmul.f32 %v262, %v264
        %v266 = vadd.f32 %v262, %v265
        %vm267 = vweird.f32 %v261
        %vm268 = vweird.f32 %v262
        %vm269 = vmor %vm267, %vm268
        %v270 = vsel %vm269, %v262, %v266
        %v271 = vand.u32 2147483647, %v261
        %vm272 = vcmp.eq.f32.partialorder %v271, 8.507059e+37
        %v273 = vand.u32 %v261, 2147483648
        %v274 = vor.u32 1.1754944e-38, %v273
        %v275 = vsel %vm272, %v274, %v270
        %v276 = vmul.f32 %v260, %v275
        %v277 = vld [vmem:[%s1] sm:$0xf]
        %v278 = vld [vmem:[%s2] sm:$0xf]
        %v279 = vld [vmem:[%s3] sm:$0xf]
        %v280 = vmul.f32 %v277, %v276
        %vm281 = vcmask 11264
        %v282 = vsel %vm281, %v280, 0.0
        %v283 = vrot.slane %v282, 4
        %v284 = vadd.f32 %v282, %v283
        %v285 = vrot.slane %v284, 2
        %v286 = vadd.f32 %v284, %v285
        %v287 = vrot.slane %v286, 1
        %v288 = vadd.f32 %v286, %v287
        %v289 = vmax.f32 %v288, 0.0
        %v290 = vmul.f32 %v278, %v289
        %v291 = vsel %vm281, %v290, 0.0
        %292 = vadd.xlane.f32.xlu0 %v291
        %v293 = vpop.xlane.xlu0 %292
        %v294 = vadd.f32 %v293, %v279
        %vm295 = vcmask 3072
        %v296 = vsel %vm295, %v294, -inf
        %v297 = vrot.slane %v296, 4
        %v298 = vmax.f32 %v296, %v297
        %v299 = vrot.slane %v298, 2
        %v300 = vmax.f32 %v298, %v299
        %v301 = vrot.slane %v300, 1
        %v302 = vmax.f32 %v300, %v301
        %v303 = vsub.f32 %v294, %v302
        %v304 = vmul.f32 %v303, 1.442695
        %v305 = vpow.pop %v304
        %v306 = vsel %vm295, %v305, 0.0
        %v307 = vrot.slane %v306, 4
        %v308 = vadd.f32 %v306, %v307
        %v309 = vrot.slane %v308, 2
        %v310 = vadd.f32 %v308, %v309
        %v311 = vrot.slane %v310, 1
        %v312 = vadd.f32 %v310, %v311
        %v313 = vrcp.pop %v312
        %v314 = vmul.f32 %v312, %v313
        %v315 = vsub.f32 1.0, %v314
        %v316 = vmul.f32 %v313, %v315
        %v317 = vadd.f32 %v313, %v316
        %vm318 = vweird.f32 %v312
        %vm319 = vweird.f32 %v313
        %vm320 = vmor %vm318, %vm319
        %v321 = vsel %vm320, %v313, %v317
        %v322 = vand.u32 2147483647, %v312
        %vm323 = vcmp.eq.f32.partialorder %v322, 8.507059e+37
        %v324 = vand.u32 %v312, 2147483648
        %v325 = vor.u32 1.1754944e-38, %v324
        %v326 = vsel %vm323, %v325, %v321
        %v327 = vmul.f32 %v305, %v326
        %329 = vset.pattern.permute.xlu0 0
        %330 = vperm.xlu0 %329, %v327
        %v331 = vpop.permute.xlu0 %330
        %v333 = vunpack.c.l.s4 839922192
        %v334 = vunpack.c.0.s8 %v333
        %v335 = vperm.slane %v331, %v334
        %v337 = vmul.f32 %v216, %v335
        %338 = vst [vmem:[%s215] sm:$0xff] %v337
        %s339 = sand.u32 %s118, 1
        %s340 = scalar_lea.sflag [#allocation4], %s339
        %s341 = sand.u32 %s118, 1
        %s342 = smul.addr %s341, 8
        %s343 = scalar_lea.vmem [#allocation5], %s342
        // Predicated region
        $region41: #{tpu_custom_call.1} parent=35 // pred_check
          %p344 = pneg %p128
        $region42: #{tpu_custom_call.1} parent=35 // pred_check_branch
          %346 = sbr.rel (%p344) target = $region44
        $region43: #{tpu_custom_call.1} parent=35 // pred_region
          %348 = vsyncadd %s340, 0
          %s349 = smul.addr %s21, 2
          %s350 = smul.addr %s349, 4
          %s351 = scalar_lea.hbm %s4, %s350
          %s353 = sshll.u32 %s343, 4
          %s354 = int_to_ptr.vmem [resolvable:$true] %s353
          %s355 = sshll.u32 %s351, 4
          %s356 = int_to_ptr.hbm [resolvable:$true] %s355
          %358 = dma.vmem_to_hbm [thread:$0]  %s354, 128, %s356, %s340
        $region44: #{tpu_custom_call.1} parent=35 // pred_fallthru
          _
      $region36: #{tpu_custom_call.1} parent=5 // pred_fallthru
        _
      %p359 = scmp.le.s32.totalorder 2, %s16
      // Predicated region
      $region45: #{tpu_custom_call.1} parent=5 // pred_check
        %p360 = pneg %p359
      $region46: #{tpu_custom_call.1} parent=5 // pred_check_branch
        %362 = sbr.rel (%p360) target = $region48
      $region47: #{tpu_custom_call.1} parent=5 // pred_region
        %s363 = ssub.s32 %s16, 2
        // Predicated region
        $region49: #{tpu_custom_call.1} parent=47 // pred_check
          %p364 = pneg %p134
        $region50: #{tpu_custom_call.1} parent=47 // pred_check_branch
          %366 = sbr.rel (%p364) target = $region52
        $region51: #{tpu_custom_call.1} parent=47 // pred_region
          %s367 = sand.u32 %s119, 1
          %s368 = scalar_lea.sflag [#allocation4], %s367
          %s369 = sand.u32 %s119, 1
          %s370 = smul.addr %s369, 8
          %s371 = scalar_lea.vmem [#allocation5], %s370
          %373 = dma.done %s368, 128
        $region52: #{tpu_custom_call.1} parent=47 // pred_fallthru
          _
      $region48: #{tpu_custom_call.1} parent=5 // pred_fallthru
        _
    $region6: #{tpu_custom_call.1} parent=1 // loop_footer
      %s20 = sadd.s32 1, %s16
    $region7: #{tpu_custom_call.1} parent=1 // loop_footer_branch
      %15 = sbr.rel target = $region3
    $region8: #{tpu_custom_call.1} parent=1 // loop_exit
      _
    %374 = vsyncpa [#allocation3], 1
    %s375 = scalar_lea.sflag [#allocation3], 1
    %376 = vsyncpa %s375, 1
    %377 = vsyncpa [#allocation4], 1
    %s378 = scalar_lea.sflag [#allocation4], 1
    %379 = vsyncpa %s378, 1

</llo_original>
